<compile_context>
chip_gen: v6e
topology: v6e:2x2x1
jax: 0.10.0
libtpu: 0.0.40
codegen_flags: <defaults>
</compile_context>

<pallas_src>
import functools

import jax
import jax.numpy as jnp
import numpy as np
from jax.experimental import pallas as pl
from jax.experimental.pallas import tpu as pltpu


def _erpp_loss_kernel(true_b, times_ref, et_ref, logp_ref, w_ref, out_ref,
                      acc_sq_ref, acc_wlp_ref, acc_w_ref):
    """Accumulates sum(diff^2), sum(w[y]*logp[y]) and sum(w[y]) over the batch.

    Grid is (num_core_splits, tiles_per_split): axis 0 is "parallel" (one
    TensorCore per split on v7x), axis 1 is the sequential batch reduction.
    """
    t = pl.program_id(1)

    @pl.when(t == 0)
    def _init():
        acc_sq_ref[...] = jnp.zeros_like(acc_sq_ref)
        acc_wlp_ref[...] = jnp.zeros_like(acc_wlp_ref)
        acc_w_ref[...] = jnp.zeros_like(acc_w_ref)

    c, tb = logp_ref.shape

    # Validity mask for the (possibly overhanging) last tile: inputs are NOT
    # padded in the wrapper and OOB lanes of a partial edge block are
    # undefined, so they must be masked out here.
    tile_idx = pl.program_id(0) * pl.num_programs(1) + t
    lane = jax.lax.broadcasted_iota(jnp.int32, (1, tb), 1)
    valid = (tile_idx * tb + lane) < true_b                       # [1, tb] bool

    # ---- time loss partial: sum of squared diffs ----------------------------
    times = times_ref[...].astype(jnp.float32)                    # [2, tb]
    diff = jnp.where(valid, times[0:1, :] - times[1:2, :], 0.0)
    acc_sq_ref[...] += diff * diff

    # ---- event loss partial: one-hot gather, class axis collapsed per tile --
    logp = logp_ref[...].astype(jnp.float32)                      # [C, tb]
    w = w_ref[...].astype(jnp.float32)                            # [C, 1]
    et = et_ref[...]                                              # [1, tb] int32
    cls = jax.lax.broadcasted_iota(jnp.int32, (c, 1), 0)          # [C, 1] class id
    sel = cls == et                                               # [C, tb] one-hot

    # NaN-safe gather (never 0 * -inf); reduce over the class axis here (XLU
    # sublane reduce) so only [1, tb] vectors are accumulated across tiles.
    lp_sel = jnp.sum(jnp.where(sel, logp, 0.0), axis=0, keepdims=True)  # logp[y]
    w_sel = jnp.sum(jnp.where(sel, w, 0.0), axis=0, keepdims=True)      # w[y]
    lp_sel = jnp.where(valid, lp_sel, 0.0)
    w_sel = jnp.where(valid, w_sel, 0.0)
    acc_wlp_ref[...] += w_sel * lp_sel
    acc_w_ref[...] += w_sel

    # ---- emit this split's partial sums (row 0, lanes 0..2) -----------------
    @pl.when(t == pl.num_programs(1) - 1)
    def _finalize():
        s_sq = jnp.sum(acc_sq_ref[...])
        s_wlp = jnp.sum(acc_wlp_ref[...])
        s_w = jnp.sum(acc_w_ref[...])
        sub = jax.lax.broadcasted_iota(jnp.int32, (1, 8, 128), 1)
        ln = jax.lax.broadcasted_iota(jnp.int32, (1, 8, 128), 2)
        row0 = sub == 0
        out_ref[...] = jnp.where(
            row0 & (ln == 0), s_sq,
            jnp.where(row0 & (ln == 1), s_wlp,
                      jnp.where(row0 & (ln == 2), s_w, 0.0)))


def erpp_loss(time_pred, event_logp, target, class_weight, loss_alpha, *,
              batch_tile=16384, num_core_splits=2, class_major=False):
    """Returns (time_loss, event_loss, loss_alpha * time_loss + event_loss).

    time_pred:    [B]     predicted event times (output[0]).
    event_logp:   [B, C]  log-probabilities (output[1]).  If the producer
                          already emits class-major [C, B], pass it directly
                          with class_major=True to skip the transpose copy.
    target:       [B, 2]  col 0 = time target, col 1 = event class index.
    class_weight: [C]     NLLLoss per-class weights.
    """
    lane = 128
    if class_major:
        c, b = event_logp.shape
        logp_cm = event_logp
    else:
        b, c = event_logp.shape
        # One HBM copy; avoidable by fusing the transpose into the producer
        # (class_major=True path).  No padding anywhere: the ragged tail of
        # the last tile is masked in-kernel instead.
        logp_cm = event_logp.T

    # time_pred + time target folded into one [2, B] slab (fewer DMAs/step);
    # event target passes as int32 (no f32 round-trip, no per-tile cast).
    times = jnp.concatenate(
        [time_pred.astype(jnp.float32).reshape(1, b),
         target[:, 0].astype(jnp.float32).reshape(1, b)], axis=0)     # [2, B]
    et = target[:, 1].astype(jnp.int32).reshape(1, b)                  # [1, B]
    w2 = class_weight.astype(jnp.float32).reshape(c, 1)                # [C, 1]

    itemsize = jnp.dtype(event_logp.dtype).itemsize

    # Batch tile: as many 128-lane groups as fit a ~20 MiB VMEM budget (the
    # double-buffered [C, tb] log-prob block dominates), capped by batch_tile
    # and the (128-rounded) batch size.
    per_lane_bytes = 2 * c * itemsize + 7 * 8 * 4
    budget = 20 * 1024 * 1024
    tb_cap = max(lane, (budget // per_lane_bytes) // lane * lane)
    bp = int(pl.cdiv(b, lane)) * lane
    tb = max(lane, min(int(batch_tile), bp, tb_cap) // lane * lane)

    num_tiles = int(pl.cdiv(b, tb))
    splits = max(1, min(int(num_core_splits), num_tiles))
    tiles_per_split = int(pl.cdiv(num_tiles, splits))

    def col(p, t):
        # splits * tiles_per_split may overhang num_tiles; duplicated blocks
        # are fully masked in-kernel via the `valid` lane mask.
        return jnp.minimum(p * tiles_per_split + t, num_tiles - 1)

    kernel = functools.partial(_erpp_loss_kernel, int(b))

    cost = pl.CostEstimate(
        flops=(5 * c + 10) * b,
        transcendentals=0,
        bytes_accessed=b * c * itemsize + 3 * b * 4 + c * 4
        + splits * 8 * 128 * 4,
    )

    parts = pl.pallas_call(
        kernel,
        out_shape=jax.ShapeDtypeStruct((splits, 8, 128), jnp.float32),
        grid_spec=pltpu.PrefetchScalarGridSpec(
            num_scalar_prefetch=0,
            grid=(splits, tiles_per_split),
            in_specs=[
                pl.BlockSpec((2, tb), lambda p, t: (0, col(p, t))),   # times
                pl.BlockSpec((1, tb), lambda p, t: (0, col(p, t))),   # event ids
                pl.BlockSpec((c, tb), lambda p, t: (0, col(p, t))),   # log-probs
                pl.BlockSpec((c, 1), lambda p, t: (0, 0)),            # weights
            ],
            out_specs=pl.BlockSpec((1, 8, 128), lambda p, t: (p, 0, 0)),
            scratch_shapes=[
                pltpu.VMEM((1, tb), jnp.float32),   # sum diff^2
                pltpu.VMEM((1, tb), jnp.float32),   # sum w[y] * logp[y]
                pltpu.VMEM((1, tb), jnp.float32),   # sum w[y]
            ],
        ),
        compiler_params=pltpu.CompilerParams(
            dimension_semantics=("parallel", "arbitrary"),
            vmem_limit_bytes=32 * 1024 * 1024,
        ),
        cost_estimate=cost,
    )(times, et, logp_cm, w2)

    sums = jnp.sum(parts[:, 0, :3], axis=0)      # combine per-core partials
    time_loss = sums[0] / b
    event_loss = -(sums[1] / sums[2])
    total = loss_alpha * time_loss + event_loss
    return time_loss, event_loss, total


def _reference(time_pred, event_logp, time_target, event_target, class_weight,
               loss_alpha):
    tp = np.asarray(time_pred, dtype=np.float64)
    lp = np.asarray(event_logp, dtype=np.float64)
    tt = np.asarray(time_target, dtype=np.float64)
    et = np.asarray(event_target)
    w = np.asarray(class_weight, dtype=np.float64)
    b = tp.shape[0]
    ref_time = np.mean((tp - tt) ** 2)
    picked = lp[np.arange(b), et]
    wsel = w[et]
    ref_event = -(wsel * picked).sum() / wsel.sum()
    return ref_time, ref_event, loss_alpha * ref_time + ref_event


if __name__ == "__main__":
    LOSS_ALPHA = 0.5
    C = 16

    # Deterministic "event2index" statistics (synthetic, in lieu of the pickle):
    # weight[c] = total_count / count[c] — exactly what the module computes.
    # TODO(synk): the real module loads these counts from cfg.EVENT_INDEX_FILE.
    event_counts = np.arange(1, C + 1, dtype=np.float32) * 10.0
    class_weight = jnp.asarray(event_counts.sum() / event_counts)

    loss_fn = jax.jit(
        erpp_loss,
        static_argnames=("batch_tile", "num_core_splits", "class_major"))

    key = jax.random.PRNGKey(0)

    # (B, batch_tile, class_major): single tile, ragged multi-tile with the
    # 2-way core split, multiple tiles per split, and the transpose-free
    # class-major fast path.
    cases = [(8, 16384, False), (200, 128, False), (1000, 256, False),
             (200, 128, True)]
    for B, tile, cm in cases:
        k1, k2, k3, k4, key = jax.random.split(key, 5)

        # output[0]: predicted times [B]; output[1]: log-probs [B, C].
        time_pred = jax.random.normal(k1, (B,), dtype=jnp.float32)
        logits = jax.random.normal(k2, (B, C), dtype=jnp.float32)
        event_logp = jax.nn.log_softmax(logits, axis=-1)

        # target [B, 2]: col 0 = time target (float), col 1 = event class index.
        time_target = jax.random.normal(k3, (B,), dtype=jnp.float32)
        event_target = jax.random.randint(k4, (B,), 0, C, dtype=jnp.int32)
        target = jnp.stack([time_target, event_target.astype(jnp.float32)],
                           axis=1)

        logp_arg = event_logp.T if cm else event_logp   # cm: producer emits [C, B]
        t_loss, e_loss, total = jax.block_until_ready(
            loss_fn(time_pred, logp_arg, target, class_weight, LOSS_ALPHA,
                    batch_tile=tile, class_major=cm))

        ref_time, ref_event, ref_total = _reference(
            time_pred, event_logp, time_target, event_target, class_weight,
            LOSS_ALPHA)

        np.testing.assert_allclose(np.asarray(t_loss), ref_time,
                                   rtol=1e-5, atol=1e-5)
        np.testing.assert_allclose(np.asarray(e_loss), ref_event,
                                   rtol=1e-5, atol=1e-5)
        np.testing.assert_allclose(np.asarray(total), ref_total,
                                   rtol=1e-5, atol=1e-5)

    print("KERNEL_OK")
</pallas_src>

<mosaic_0001>
module attributes {stable_mosaic.version = 11 : i64} {
  func.func @_erpp_loss_kernel(%arg0: i32, %arg1: i32, %arg2: memref<2x128xf32, #tpu.memory_space<vmem>>, %arg3: memref<1x128xi32, #tpu.memory_space<vmem>>, %arg4: memref<16x128xf32, #tpu.memory_space<vmem>>, %arg5: memref<16x1xf32, #tpu.memory_space<vmem>>, %arg6: memref<1x8x128xf32, #tpu.memory_space<vmem>>, %arg7: memref<1x128xf32, #tpu.memory_space<vmem>>, %arg8: memref<1x128xf32, #tpu.memory_space<vmem>>, %arg9: memref<1x128xf32, #tpu.memory_space<vmem>>) attributes {dimension_semantics = [#tpu.dimension_semantics<parallel>, #tpu.dimension_semantics<arbitrary>], iteration_bounds = array<i64: 1, 1>, scalar_prefetch = 0 : i64, scratch_operands = 3 : i64, tpu.core_type = #tpu.core_type<tc>, window_params = [{transform_indices = @transform_0, window_bounds = array<i64: 2, 128>}, {transform_indices = @transform_1, window_bounds = array<i64: 1, 128>}, {transform_indices = @transform_2, window_bounds = array<i64: 16, 128>}, {pipeline_mode = #tpu.pipeline_mode<synchronous>, transform_indices = @transform_3, window_bounds = array<i64: 16, 1>}, {transform_indices = @transform_4, window_bounds = array<i64: 1, 8, 128>}]} {
    %c0_i32 = arith.constant 0 : i32
    %0 = arith.cmpi eq, %arg1, %c0_i32 : i32
    %1 = arith.extui %0 : i1 to i32
    %c0_i32_0 = arith.constant 0 : i32
    %2 = arith.cmpi ne, %1, %c0_i32_0 : i32
    scf.if %2 {
      %cst_28 = arith.constant 0.000000e+00 : f32
      %52 = vector.broadcast %cst_28 : f32 to vector<1x128xf32>
      %c0_29 = arith.constant 0 : index
      %c0_30 = arith.constant 0 : index
      %53 = vector.load %arg7[%c0_29, %c0_30] : memref<1x128xf32, #tpu.memory_space<vmem>>, vector<1x128xf32>
      tpu.vector_store %arg7[%c0_29, %c0_30], %52 {strides = array<i32>} : memref<1x128xf32, #tpu.memory_space<vmem>>, vector<1x128xf32>,
      %cst_31 = arith.constant 0.000000e+00 : f32
      %54 = vector.broadcast %cst_31 : f32 to vector<1x128xf32>
      %c0_32 = arith.constant 0 : index
      %c0_33 = arith.constant 0 : index
      %55 = vector.load %arg8[%c0_32, %c0_33] : memref<1x128xf32, #tpu.memory_space<vmem>>, vector<1x128xf32>
      tpu.vector_store %arg8[%c0_32, %c0_33], %54 {strides = array<i32>} : memref<1x128xf32, #tpu.memory_space<vmem>>, vector<1x128xf32>,
      %cst_34 = arith.constant 0.000000e+00 : f32
      %56 = vector.broadcast %cst_34 : f32 to vector<1x128xf32>
      %c0_35 = arith.constant 0 : index
      %c0_36 = arith.constant 0 : index
      %57 = vector.load %arg9[%c0_35, %c0_36] : memref<1x128xf32, #tpu.memory_space<vmem>>, vector<1x128xf32>
      tpu.vector_store %arg9[%c0_35, %c0_36], %56 {strides = array<i32>} : memref<1x128xf32, #tpu.memory_space<vmem>>, vector<1x128xf32>,
    } else {
    }
    %c1_i32 = arith.constant 1 : i32
    %3 = arith.muli %arg0, %c1_i32 : i32
    %4 = arith.addi %3, %arg1 : i32
    %5 = tpu.iota {dimensions = array<i32: 1>} : vector<1x128xi32>
    %c128_i32 = arith.constant 128 : i32
    %6 = arith.muli %4, %c128_i32 : i32
    %7 = vector.broadcast %6 : i32 to vector<1x128xi32>
    %8 = arith.addi %7, %5 : vector<1x128xi32>
    %c8_i32 = arith.constant 8 : i32
    %9 = vector.broadcast %c8_i32 : i32 to vector<1x128xi32>
    %10 = arith.cmpi slt, %8, %9 : vector<1x128xi32>
    %c0 = arith.constant 0 : index
    %c0_1 = arith.constant 0 : index
    %11 = vector.load %arg2[%c0, %c0_1] : memref<2x128xf32, #tpu.memory_space<vmem>>, vector<2x128xf32>
    %12 = vector.extract_strided_slice %11 {offsets = [0, 0], sizes = [1, 128], strides = [1, 1]} : vector<2x128xf32> to vector<1x128xf32>
    %13 = vector.extract_strided_slice %11 {offsets = [1, 0], sizes = [1, 128], strides = [1, 1]} : vector<2x128xf32> to vector<1x128xf32>
    %14 = arith.subf %12, %13 : vector<1x128xf32>
    %cst = arith.constant 0.000000e+00 : f32
    %15 = vector.broadcast %cst : f32 to vector<1x128xf32>
    %16 = arith.select %10, %14, %15 : vector<1x128xi1>, vector<1x128xf32>
    %c0_2 = arith.constant 0 : index
    %c0_3 = arith.constant 0 : index
    %17 = vector.load %arg7[%c0_2, %c0_3] : memref<1x128xf32, #tpu.memory_space<vmem>>, vector<1x128xf32>
    %18 = arith.mulf %16, %16 : vector<1x128xf32>
    %19 = arith.addf %17, %18 : vector<1x128xf32>
    %c0_4 = arith.constant 0 : index
    %c0_5 = arith.constant 0 : index
    %20 = vector.load %arg7[%c0_4, %c0_5] : memref<1x128xf32, #tpu.memory_space<vmem>>, vector<1x128xf32>
    tpu.vector_store %arg7[%c0_4, %c0_5], %19 {strides = array<i32>} : memref<1x128xf32, #tpu.memory_space<vmem>>, vector<1x128xf32>,
    %c0_6 = arith.constant 0 : index
    %c0_7 = arith.constant 0 : index
    %21 = vector.load %arg4[%c0_6, %c0_7] : memref<16x128xf32, #tpu.memory_space<vmem>>, vector<16x128xf32>
    %c0_8 = arith.constant 0 : index
    %c0_9 = arith.constant 0 : index
    %22 = vector.load %arg5[%c0_8, %c0_9] : memref<16x1xf32, #tpu.memory_space<vmem>>, vector<16x1xf32>
    %c0_10 = arith.constant 0 : index
    %c0_11 = arith.constant 0 : index
    %23 = vector.load %arg3[%c0_10, %c0_11] : memref<1x128xi32, #tpu.memory_space<vmem>>, vector<1x128xi32>
    %24 = tpu.iota {dimensions = array<i32: 0>} : vector<16x1xi32>
    %25 = vector.broadcast %24 : vector<16x1xi32> to vector<16x128xi32>
    %26 = vector.broadcast %23 : vector<1x128xi32> to vector<16x128xi32>
    %27 = arith.cmpi eq, %25, %26 : vector<16x128xi32>
    %cst_12 = arith.constant 0.000000e+00 : f32
    %28 = vector.broadcast %cst_12 : f32 to vector<16x128xf32>
    %29 = arith.select %27, %21, %28 : vector<16x128xi1>, vector<16x128xf32>
    %cst_13 = arith.constant dense<0.000000e+00> : vector<128xf32>
    %30 = vector.multi_reduction <add>, %29, %cst_13 [0] : vector<16x128xf32> to vector<128xf32>
    %31 = vector.shape_cast %30 : vector<128xf32> to vector<1x128xf32>
    %cst_14 = arith.constant 0.000000e+00 : f32
    %32 = vector.shape_cast %22 : vector<16x1xf32> to vector<16x1xf32>
    %33 = vector.broadcast %32 : vector<16x1xf32> to vector<16x128xf32>
    %34 = vector.broadcast %cst_14 : f32 to vector<16x128xf32>
    %35 = arith.select %27, %33, %34 : vector<16x128xi1>, vector<16x128xf32>
    %cst_15 = arith.constant dense<0.000000e+00> : vector<128xf32>
    %36 = vector.multi_reduction <add>, %35, %cst_15 [0] : vector<16x128xf32> to vector<128xf32>
    %37 = vector.shape_cast %36 : vector<128xf32> to vector<1x128xf32>
    %cst_16 = arith.constant 0.000000e+00 : f32
    %38 = vector.broadcast %cst_16 : f32 to vector<1x128xf32>
    %39 = arith.select %10, %31, %38 : vector<1x128xi1>, vector<1x128xf32>
    %cst_17 = arith.constant 0.000000e+00 : f32
    %40 = vector.broadcast %cst_17 : f32 to vector<1x128xf32>
    %41 = arith.select %10, %37, %40 : vector<1x128xi1>, vector<1x128xf32>
    %c0_18 = arith.constant 0 : index
    %c0_19 = arith.constant 0 : index
    %42 = vector.load %arg8[%c0_18, %c0_19] : memref<1x128xf32, #tpu.memory_space<vmem>>, vector<1x128xf32>
    %43 = arith.mulf %41, %39 : vector<1x128xf32>
    %44 = arith.addf %42, %43 : vector<1x128xf32>
    %c0_20 = arith.constant 0 : index
    %c0_21 = arith.constant 0 : index
    %45 = vector.load %arg8[%c0_20, %c0_21] : memref<1x128xf32, #tpu.memory_space<vmem>>, vector<1x128xf32>
    tpu.vector_store %arg8[%c0_20, %c0_21], %44 {strides = array<i32>} : memref<1x128xf32, #tpu.memory_space<vmem>>, vector<1x128xf32>,
    %c0_22 = arith.constant 0 : index
    %c0_23 = arith.constant 0 : index
    %46 = vector.load %arg9[%c0_22, %c0_23] : memref<1x128xf32, #tpu.memory_space<vmem>>, vector<1x128xf32>
    %47 = arith.addf %46, %41 : vector<1x128xf32>
    %c0_24 = arith.constant 0 : index
    %c0_25 = arith.constant 0 : index
    %48 = vector.load %arg9[%c0_24, %c0_25] : memref<1x128xf32, #tpu.memory_space<vmem>>, vector<1x128xf32>
    tpu.vector_store %arg9[%c0_24, %c0_25], %47 {strides = array<i32>} : memref<1x128xf32, #tpu.memory_space<vmem>>, vector<1x128xf32>,
    %c0_i32_26 = arith.constant 0 : i32
    %49 = arith.cmpi eq, %arg1, %c0_i32_26 : i32
    %50 = arith.extui %49 : i1 to i32
    %c0_i32_27 = arith.constant 0 : i32
    %51 = arith.cmpi ne, %50, %c0_i32_27 : i32
    scf.if %51 {
      %c0_28 = arith.constant 0 : index
      %c0_29 = arith.constant 0 : index
      %52 = vector.load %arg7[%c0_28, %c0_29] : memref<1x128xf32, #tpu.memory_space<vmem>>, vector<1x128xf32>
      %53 = vector.shape_cast %52 : vector<1x128xf32> to vector<1x1x128xf32>
      %cst_30 = arith.constant dense<0.000000e+00> : vector<1xf32>
      %54 = vector.multi_reduction <add>, %53, %cst_30 [1, 2] : vector<1x1x128xf32> to vector<1xf32>
      %55 = vector.shape_cast %54 : vector<1xf32> to vector<1x1x1xf32>
      %56 = vector.extract %55[0, 0, 0] : f32 from vector<1x1x1xf32>
      %c0_31 = arith.constant 0 : index
      %c0_32 = arith.constant 0 : index
      %57 = vector.load %arg8[%c0_31, %c0_32] : memref<1x128xf32, #tpu.memory_space<vmem>>, vector<1x128xf32>
      %58 = vector.shape_cast %57 : vector<1x128xf32> to vector<1x1x128xf32>
      %cst_33 = arith.constant dense<0.000000e+00> : vector<1xf32>
      %59 = vector.multi_reduction <add>, %58, %cst_33 [1, 2] : vector<1x1x128xf32> to vector<1xf32>
      %60 = vector.shape_cast %59 : vector<1xf32> to vector<1x1x1xf32>
      %61 = vector.extract %60[0, 0, 0] : f32 from vector<1x1x1xf32>
      %c0_34 = arith.constant 0 : index
      %c0_35 = arith.constant 0 : index
      %62 = vector.load %arg9[%c0_34, %c0_35] : memref<1x128xf32, #tpu.memory_space<vmem>>, vector<1x128xf32>
      %63 = vector.shape_cast %62 : vector<1x128xf32> to vector<1x1x128xf32>
      %cst_36 = arith.constant dense<0.000000e+00> : vector<1xf32>
      %64 = vector.multi_reduction <add>, %63, %cst_36 [1, 2] : vector<1x1x128xf32> to vector<1xf32>
      %65 = vector.shape_cast %64 : vector<1xf32> to vector<1x1x1xf32>
      %66 = vector.extract %65[0, 0, 0] : f32 from vector<1x1x1xf32>
      %67 = tpu.iota {dimensions = array<i32: 1>} : vector<1x8x128xi32>
      %68 = tpu.iota {dimensions = array<i32: 2>} : vector<1x8x128xi32>
      %c0_i32_37 = arith.constant 0 : i32
      %69 = vector.broadcast %c0_i32_37 : i32 to vector<1x8x128xi32>
      %70 = arith.cmpi eq, %67, %69 : vector<1x8x128xi32>
      %c0_i32_38 = arith.constant 0 : i32
      %71 = vector.broadcast %c0_i32_38 : i32 to vector<1x8x128xi32>
      %72 = arith.cmpi eq, %68, %71 : vector<1x8x128xi32>
      %73 = arith.andi %70, %72 : vector<1x8x128xi1>
      %c1_i32_39 = arith.constant 1 : i32
      %74 = vector.broadcast %c1_i32_39 : i32 to vector<1x8x128xi32>
      %75 = arith.cmpi eq, %68, %74 : vector<1x8x128xi32>
      %76 = arith.andi %70, %75 : vector<1x8x128xi1>
      %c2_i32 = arith.constant 2 : i32
      %77 = vector.broadcast %c2_i32 : i32 to vector<1x8x128xi32>
      %78 = arith.cmpi eq, %68, %77 : vector<1x8x128xi32>
      %79 = arith.andi %70, %78 : vector<1x8x128xi1>
      %cst_40 = arith.constant 0.000000e+00 : f32
      %80 = vector.broadcast %66 : f32 to vector<1x8x128xf32>
      %81 = vector.broadcast %cst_40 : f32 to vector<1x8x128xf32>
      %82 = arith.select %79, %80, %81 : vector<1x8x128xi1>, vector<1x8x128xf32>
      %83 = vector.broadcast %61 : f32 to vector<1x8x128xf32>
      %84 = arith.select %76, %83, %82 : vector<1x8x128xi1>, vector<1x8x128xf32>
      %85 = vector.broadcast %56 : f32 to vector<1x8x128xf32>
      %86 = arith.select %73, %85, %84 : vector<1x8x128xi1>, vector<1x8x128xf32>
      %c0_41 = arith.constant 0 : index
      %c0_42 = arith.constant 0 : index
      %c0_43 = arith.constant 0 : index
      %87 = vector.load %arg6[%c0_41, %c0_42, %c0_43] : memref<1x8x128xf32, #tpu.memory_space<vmem>>, vector<1x8x128xf32>
      tpu.vector_store %arg6[%c0_41, %c0_42, %c0_43], %86 {strides = array<i32>} : memref<1x8x128xf32, #tpu.memory_space<vmem>>, vector<1x8x128xf32>,
    } else {
    }
    return
  }
  func.func @transform_0(%arg0: i32, %arg1: i32) -> (i32, i32) {
    %c1_i32 = arith.constant 1 : i32
    %0 = arith.muli %arg0, %c1_i32 : i32
    %1 = arith.addi %0, %arg1 : i32
    %c0_i32 = arith.constant 0 : i32
    %2 = arith.minsi %1, %c0_i32 : i32
    %c0_i32_0 = arith.constant 0 : i32
    %c0_i32_1 = arith.constant 0 : i32
    return %c0_i32_0, %2 : i32, i32
  }
  func.func @transform_1(%arg0: i32, %arg1: i32) -> (i32, i32) {
    %c1_i32 = arith.constant 1 : i32
    %0 = arith.muli %arg0, %c1_i32 : i32
    %1 = arith.addi %0, %arg1 : i32
    %c0_i32 = arith.constant 0 : i32
    %2 = arith.minsi %1, %c0_i32 : i32
    %c0_i32_0 = arith.constant 0 : i32
    %c0_i32_1 = arith.constant 0 : i32
    return %c0_i32_0, %2 : i32, i32
  }
  func.func @transform_2(%arg0: i32, %arg1: i32) -> (i32, i32) {
    %c1_i32 = arith.constant 1 : i32
    %0 = arith.muli %arg0, %c1_i32 : i32
    %1 = arith.addi %0, %arg1 : i32
    %c0_i32 = arith.constant 0 : i32
    %2 = arith.minsi %1, %c0_i32 : i32
    %c0_i32_0 = arith.constant 0 : i32
    %c0_i32_1 = arith.constant 0 : i32
    return %c0_i32_0, %2 : i32, i32
  }
  func.func @transform_3(%arg0: i32, %arg1: i32) -> (i32, i32) {
    %c0_i32 = arith.constant 0 : i32
    %c0_i32_0 = arith.constant 0 : i32
    %c0_i32_1 = arith.constant 0 : i32
    return %c0_i32, %c0_i32_0 : i32, i32
  }
  func.func @transform_4(%arg0: i32, %arg1: i32) -> (i32, i32, i32) {
    %c0_i32 = arith.constant 0 : i32
    %c0_i32_0 = arith.constant 0 : i32
    %c0_i32_1 = arith.constant 0 : i32
    return %arg0, %c0_i32, %c0_i32_0 : i32, i32, i32
  }
}

</mosaic_0001>

<llo_original>
// kernel: erpp_loss.1
$region0: #{erpp_loss.1}
  #allocation0 [shape = 'u32[]', space=smem, size = 0x4, offset = 0x4, fixed_abs, tag = 'smem constant byte address 0x4 - core index']
  #allocation1 [shape = 'u32[144,128]{1,0:T(1,128)}', space=vmem, size = 0x12000, scoped, tag = 'internal scratch']
  #allocation2 [shape = 'f32[1,128]{1,0:T(1,128)}', space=vmem, size = 0x200, scoped, tag = 'scratch operand']
  #allocation3 [shape = 'f32[1,128]{1,0:T(1,128)}', space=vmem, size = 0x200, scoped, tag = 'scratch operand']
  #allocation4 [shape = 'f32[1,128]{1,0:T(1,128)}', space=vmem, size = 0x200, scoped, tag = 'scratch operand']
  %s0 = inlined_call_operand.vmem [shape: f32[2,8], index: 0, kind: input, shape index: {}]
  %s1 = inlined_call_operand.vmem [shape: s32[1,8], index: 1, kind: input, shape index: {}]
  %s2 = inlined_call_operand.vmem [shape: f32[16,8], index: 2, kind: input, shape index: {}]
  %s3 = inlined_call_operand.vmem [shape: f32[16,1], index: 3, kind: input, shape index: {}]
  %s4 = inlined_call_operand.vmem [shape: f32[1,8,128], index: 4, kind: output, shape index: {}]
  %s5 = sld [smem:[#allocation0]]
  $region34: #{erpp_loss.1} parent=0
    _
  %s7 = ssub.s32 1, %s5
  %s8 = scalar_select 0, %s7, %s5
  // Predicated region
  $region2: #{erpp_loss.1} parent=0 // pred_check
    _
  $region3: #{erpp_loss.1} parent=0 // pred_check_branch
    %10 = sbr.rel (0) target = $region5
  $region4: #{erpp_loss.1} parent=0 // pred_region
    %s11 = sadd.s32 0, 0
    %p12 = scmp.lt.s32.totalorder %s11, 0
    %s13 = scalar_select %p12, %s11, 0
    %p14 = scmp.lt.s32.totalorder %s13, 0
    %s15 = scalar_select %p14, %s13, 0
    %s16 = smul.addr %s15, 2
    %s17 = scalar_lea.vmem %s0, %s16
    %s18 = sadd.s32 0, 0
    %p19 = scmp.lt.s32.totalorder %s18, 0
    %s20 = scalar_select %p19, %s18, 0
  $region5: #{erpp_loss.1} parent=0 // pred_fallthru
    _
  // Predicated region
  $region6: #{erpp_loss.1} parent=0 // pred_check
    _
  $region7: #{erpp_loss.1} parent=0 // pred_check_branch
    %22 = sbr.rel (0) target = $region9
  $region8: #{erpp_loss.1} parent=0 // pred_region
    %s23 = sadd.s32 0, 0
    %p24 = scmp.lt.s32.totalorder %s23, 0
    %s25 = scalar_select %p24, %s23, 0
    %p26 = scmp.lt.s32.totalorder %s25, 0
    %s27 = scalar_select %p26, %s25, 0
    %s28 = scalar_lea.vmem %s1, %s27
    %s29 = sadd.s32 0, 0
    %p30 = scmp.lt.s32.totalorder %s29, 0
    %s31 = scalar_select %p30, %s29, 0
  $region9: #{erpp_loss.1} parent=0 // pred_fallthru
    _
  // Predicated region
  $region10: #{erpp_loss.1} parent=0 // pred_check
    _
  $region11: #{erpp_loss.1} parent=0 // pred_check_branch
    %33 = sbr.rel (0) target = $region13
  $region12: #{erpp_loss.1} parent=0 // pred_region
    %s34 = sadd.s32 0, 0
    %p35 = scmp.lt.s32.totalorder %s34, 0
    %s36 = scalar_select %p35, %s34, 0
    %p37 = scmp.lt.s32.totalorder %s36, 0
    %s38 = scalar_select %p37, %s36, 0
    %s39 = smul.addr %s38, 8
    %s40 = scalar_lea.vmem %s2, %s39
    %s41 = sadd.s32 0, 0
    %p42 = scmp.lt.s32.totalorder %s41, 0
    %s43 = scalar_select %p42, %s41, 0
  $region13: #{erpp_loss.1} parent=0 // pred_fallthru
    _
  // Predicated region
  $region14: #{erpp_loss.1} parent=0 // pred_check
    _
  $region15: #{erpp_loss.1} parent=0 // pred_check_branch
    %45 = sbr.rel (0) target = $region17
  $region16: #{erpp_loss.1} parent=0 // pred_region
    _
  $region17: #{erpp_loss.1} parent=0 // pred_fallthru
    _
  %s46 = sadd.s32 0, 0
  %p47 = scmp.lt.s32.totalorder %s46, 0
  %s48 = scalar_select %p47, %s46, 0
  %p49 = scmp.lt.s32.totalorder %s48, 0
  %s50 = scalar_select %p49, %s48, 0
  %s51 = smul.addr %s50, 2
  %s52 = scalar_lea.vmem %s0, %s51
  %s53 = sadd.s32 0, 0
  %p54 = scmp.lt.s32.totalorder %s53, 0
  %s55 = scalar_select %p54, %s53, 0
  %p56 = scmp.lt.s32.totalorder %s55, 0
  %s57 = scalar_select %p56, %s55, 0
  %s58 = scalar_lea.vmem %s1, %s57
  %s59 = sadd.s32 0, 0
  %p60 = scmp.lt.s32.totalorder %s59, 0
  %s61 = scalar_select %p60, %s59, 0
  %p62 = scmp.lt.s32.totalorder %s61, 0
  %s63 = scalar_select %p62, %s61, 0
  %s64 = smul.addr %s63, 8
  %s65 = scalar_lea.vmem %s2, %s64
  %s66 = sadd.s32 0, 0
  %p67 = scmp.lt.s32.totalorder %s66, 0
  %s68 = scalar_select %p67, %s66, 0
  %p69 = scmp.lt.s32.totalorder %s68, 0
  %s70 = scalar_select %p69, %s68, 0
  %s71 = smul.addr %s70, 2
  %s72 = scalar_lea.vmem %s0, %s71
  %s73 = sadd.s32 0, 0
  %p74 = scmp.lt.s32.totalorder %s73, 0
  %s75 = scalar_select %p74, %s73, 0
  %s76 = sadd.s32 0, 0
  %p77 = scmp.lt.s32.totalorder %s76, 0
  %s78 = scalar_select %p77, %s76, 0
  %p79 = scmp.lt.s32.totalorder %s78, 0
  %s80 = scalar_select %p79, %s78, 0
  %s81 = scalar_lea.vmem %s1, %s80
  %s82 = sadd.s32 0, 0
  %p83 = scmp.lt.s32.totalorder %s82, 0
  %s84 = scalar_select %p83, %s82, 0
  %s85 = sadd.s32 0, 0
  %p86 = scmp.lt.s32.totalorder %s85, 0
  %s87 = scalar_select %p86, %s85, 0
  %p88 = scmp.lt.s32.totalorder %s87, 0
  %s89 = scalar_select %p88, %s87, 0
  %s90 = smul.addr %s89, 8
  %s91 = scalar_lea.vmem %s2, %s90
  %s92 = sadd.s32 0, 0
  %p93 = scmp.lt.s32.totalorder %s92, 0
  %s94 = scalar_select %p93, %s92, 0
  %p95 = scmp.eq.s32.totalorder 0, 0
  // Predicated region
  $region18: #{erpp_loss.1} parent=0 // pred_check
    %p96 = pneg %p95
  $region19: #{erpp_loss.1} parent=0 // pred_check_branch
    %98 = sbr.rel (%p96) target = $region21
  $region20: #{erpp_loss.1} parent=0 // pred_region
    %99 = vst [vmem:[#allocation2] sm:$0x1] 0.0
    %100 = vst [vmem:[#allocation3] sm:$0x1] 0.0
    %101 = vst [vmem:[#allocation4] sm:$0x1] 0.0
  $region21: #{erpp_loss.1} parent=0 // pred_fallthru
    _
  %s102 = sadd.s32 0, 0
  %v103 = vlaneseq
  %v104 = vand.u32 %v103, 127
  %s105 = smul.u32 %s102, 128
  %v106 = vstv %s105
  %v107 = vadd.s32 %v106, %v104
  %vm108 = vcmp.lt.s32.totalorder %v107, 8
  %v109 = vld [vmem:[%s72] sm:$0x3]
  %v111 = vrot.slane %v109, 1
  %v113 = vsub.f32 %v109, %v111
  %v114 = vsel %vm108, %v113, 0.0
  %v115 = vld [vmem:[#allocation2] sm:$0x1]
  %v116 = vmul.f32 %v114, %v114
  %v117 = vadd.f32 %v115, %v116
  %118 = vst [vmem:[#allocation2] sm:$0x1] %v117
  %v119 = vld [vmem:[%s91] sm:$0xff]
  %v120 = vld [vmem:[%s91 + $0x8] sm:$0xff]
  %v121 = vld [vmem:[%s3] sm:$0xff]
  %v122 = vld [vmem:[%s3 + $0x8] sm:$0xff]
  %v123 = vld [vmem:[%s81] sm:$0x1]
  %v124 = vlaneseq
  %v125 = vshrl.u32 %v124, 7
  %v126 = vadd.s32 %v125, 8
  %v127 = vlaneseq
  %v128 = vshrl.u32 %v127, 7
  %v129 = vsub.s32 0, %v128
  %v130 = vrot.slane %v123, %v129
  %vm131 = vcmp.eq.s32.totalorder %v125, %v130
  %vm132 = vcmp.eq.s32.totalorder %v126, %v130
  %v133 = vsel %vm131, %v119, 0.0
  %v134 = vsel %vm132, %v120, 0.0
  %v135 = vadd.f32 %v133, %v134
  %v136 = vrot.slane %v135, 4
  %v137 = vadd.f32 %v135, %v136
  %v138 = vrot.slane %v137, 2
  %v139 = vadd.f32 %v137, %v138
  %v140 = vrot.slane %v139, 1
  %v141 = vadd.f32 %v139, %v140
  %143 = vset.pattern.permute.xlu0 0
  %144 = vperm.xlu0 %143, %v121
  %v145 = vpop.permute.xlu0 %144
  %148 = vset.pattern.permute.xlu0 0
  %149 = vperm.xlu0 %148, %v122
  %v150 = vpop.permute.xlu0 %149
  %v152 = vsel %vm131, %v145, 0.0
  %v153 = vsel %vm132, %v150, 0.0
  %v154 = vadd.f32 %v152, %v153
  %v155 = vrot.slane %v154, 4
  %v156 = vadd.f32 %v154, %v155
  %v157 = vrot.slane %v156, 2
  %v158 = vadd.f32 %v156, %v157
  %v159 = vrot.slane %v158, 1
  %v160 = vadd.f32 %v158, %v159
  %v161 = vsel %vm108, %v141, 0.0
  %v162 = vsel %vm108, %v160, 0.0
  %v163 = vld [vmem:[#allocation3] sm:$0x1]
  %v164 = vmul.f32 %v162, %v161
  %v165 = vadd.f32 %v163, %v164
  %166 = vst [vmem:[#allocation3] sm:$0x1] %v165
  %v167 = vld [vmem:[#allocation4] sm:$0x1]
  %v168 = vadd.f32 %v167, %v162
  %169 = vst [vmem:[#allocation4] sm:$0x1] %v168
  // Predicated region
  $region22: #{erpp_loss.1} parent=0 // pred_check
    %p170 = pneg %p95
  $region23: #{erpp_loss.1} parent=0 // pred_check_branch
    %172 = sbr.rel (%p170) target = $region25
  $region24: #{erpp_loss.1} parent=0 // pred_region
    %v173 = vld [vmem:[#allocation2] sm:$0x1]
    %vm174 = vcmask 1040384
    %v175 = vsel %vm174, %v173, 0.0
    %176 = vadd.xlane.f32.xlu0 %v175
    %v177 = vpop.xlane.xlu0 %176
    %v178 = vrot.slane %v177, 4
    %v179 = vadd.f32 %v177, %v178
    %v180 = vrot.slane %v179, 2
    %v181 = vadd.f32 %v179, %v180
    %v182 = vrot.slane %v181, 1
    %v183 = vadd.f32 %v181, %v182
    %s184 = vtos %v183
    %v185 = vld [vmem:[#allocation3] sm:$0x1]
    %v186 = vsel %vm174, %v185, 0.0
    %187 = vadd.xlane.f32.xlu0 %v186
    %v188 = vpop.xlane.xlu0 %187
    %v189 = vrot.slane %v188, 4
    %v190 = vadd.f32 %v188, %v189
    %v191 = vrot.slane %v190, 2
    %v192 = vadd.f32 %v190, %v191
    %v193 = vrot.slane %v192, 1
    %v194 = vadd.f32 %v192, %v193
    %s195 = vtos %v194
    %v196 = vld [vmem:[#allocation4] sm:$0x1]
    %v197 = vsel %vm174, %v196, 0.0
    %198 = vadd.xlane.f32.xlu0 %v197
    %v199 = vpop.xlane.xlu0 %198
    %v200 = vrot.slane %v199, 4
    %v201 = vadd.f32 %v199, %v200
    %v202 = vrot.slane %v201, 2
    %v203 = vadd.f32 %v201, %v202
    %v204 = vrot.slane %v203, 1
    %v205 = vadd.f32 %v203, %v204
    %s206 = vtos %v205
    %vm207 = vcmp.eq.s32.totalorder %v125, 0
    %vm208 = vcmp.eq.s32.totalorder %v104, 0
    %vm209 = vmand %vm207, %vm208
    %vm210 = vcmp.eq.s32.totalorder %v104, 1
    %vm211 = vmand %vm207, %vm210
    %vm212 = vcmp.eq.s32.totalorder %v104, 2
    %vm213 = vmand %vm207, %vm212
    %v214 = vstv %s206
    %v215 = vsel %vm213, %v214, 0.0
    %v216 = vstv %s195
    %v217 = vsel %vm211, %v216, %v215
    %v218 = vstv %s184
    %v219 = vsel %vm209, %v218, %v217
    %220 = vst [vmem:[%s4] sm:$0xff] %v219
  $region25: #{erpp_loss.1} parent=0 // pred_fallthru
    _
  // Predicated region
  $region26: #{erpp_loss.1} parent=0 // pred_check
    _
  $region27: #{erpp_loss.1} parent=0 // pred_check_branch
    %222 = sbr.rel (0) target = $region29
  $region28: #{erpp_loss.1} parent=0 // pred_region
    _
  $region29: #{erpp_loss.1} parent=0 // pred_fallthru
    _
  // Predicated region
  $region30: #{erpp_loss.1} parent=0 // pred_check
    _
  $region31: #{erpp_loss.1} parent=0 // pred_check_branch
    %224 = sbr.rel (0) target = $region33
  $region32: #{erpp_loss.1} parent=0 // pred_region
    _
  $region33: #{erpp_loss.1} parent=0 // pred_fallthru
    _

</llo_original>
